<compile_context>
chip_gen: v6e
topology: v6e:2x2x1
jax: 0.10.0
libtpu: 0.0.40
codegen_flags: <defaults>
</compile_context>

<pallas_src>
import functools

import jax
import jax.numpy as jnp
from jax.experimental import pallas as pl
from jax.experimental.pallas import tpu as pltpu


# ---------------------------------------------------------------------------
# helpers
# ---------------------------------------------------------------------------
TILE_M = 512
TILE_N = 512
TILE_K = 512


def _round_up(x, m):
    return (x + m - 1) // m * m


def _pad2(x, rows, cols):
    r, c = x.shape
    if r == rows and c == cols:
        return x
    return jnp.pad(x, ((0, rows - r), (0, cols - c)))


def _node_pad(n):
    """Pad the node axis once so every propagation tile divides it exactly."""
    np_ = _round_up(max(n, 128), 128)
    if np_ > TILE_M:
        np_ = _round_up(np_, TILE_M)          # keeps Mp/tm integral (TC balance on v7x)
    return np_


# ---------------------------------------------------------------------------
# Tiled matmul kernel with a flexible fused epilogue:
#   out = [ MLP ]( [ +bias ]( [ *row_scale ]( A @ B ) ) )
# A may be an int8 HBM stream (cast to bf16 in VMEM before the MXU dot).
# ---------------------------------------------------------------------------
def _matmul_epilogue_kernel(*refs, has_scale, has_bias, n_mlp, cast_a):
    a_ref, b_ref = refs[0], refs[1]
    pos = 2
    scale_ref = refs[pos] if has_scale else None
    pos += int(has_scale)
    bias_ref = refs[pos] if has_bias else None
    pos += int(has_bias)
    mlp_refs = refs[pos:pos + 2 * n_mlp]
    o_ref, acc_ref = refs[-2], refs[-1]

    k = pl.program_id(2)

    @pl.when(k == 0)
    def _init():
        acc_ref[...] = jnp.zeros_like(acc_ref)

    a = a_ref[...]
    if cast_a:
        # int8 HBM stream (half the N x N bytes of bf16, exact small integers);
        # VPU convert to the float operand dtype so the MXU never sees integers.
        a = a.astype(jnp.float32).astype(b_ref.dtype)
    acc_ref[...] += jnp.dot(a, b_ref[...], preferred_element_type=jnp.float32)

    @pl.when(k == pl.num_programs(2) - 1)
    def _finalize():
        out = acc_ref[...]
        if has_scale:
            out = out * scale_ref[...]        # (tm, 1) row scale: dinv or dinv^2
        if has_bias:
            out = out + bias_ref[...]         # (1, tn) bias, broadcast over rows
        for li in range(n_mlp):               # fused MLP head (tiny, VMEM-resident)
            w = mlp_refs[2 * li][...]
            bm = mlp_refs[2 * li + 1][...]
            out = jnp.dot(out, w, preferred_element_type=jnp.float32) + bm
            if li < n_mlp - 1:
                out = jnp.maximum(out, 0.0)   # ReLU between layers, not after last
        o_ref[...] = out.astype(o_ref.dtype)


def fused_matmul(a, b, *, scale=None, bias=None, mlp=None, out_dtype=jnp.float32,
                 tm=TILE_M, tn=TILE_N, tk=TILE_K):
    """out = epilogue(a @ b).  Tiled, pipelined, f32 accumulation.

    a:     (M, K)  float32 / bfloat16 / int8 (int8 is cast to bf16 inside the kernel)
    b:     (K, N)
    scale: optional (M, 1) f32 row scale applied in the finalize epilogue
    bias:  optional (N,)   f32 bias
    mlp:   optional list of (w, b) layers fused after the bias (ReLU between layers);
           requires the whole padded N to fit in a single tn tile (true here: N<=128).
    Inputs are padded to block-aligned shapes (no-op when pre-padded by the caller);
    the padded result is returned (caller slices at the very end).
    """
    M, K = a.shape
    K2, N = b.shape
    assert K == K2
    if mlp is not None and len(mlp) == 0:
        mlp = None
    if mlp is not None:
        tn = max(tn, _round_up(N, 128))       # fused MLP needs the whole hidden row

    tm = min(tm, _round_up(M, 32))            # 32: int8-safe sublane multiple
    tn = min(tn, _round_up(N, 128))
    tk = min(tk, _round_up(K, 128))
    Mp, Kp, Np = _round_up(M, tm), _round_up(K, tk), _round_up(N, tn)

    a_p = _pad2(a, Mp, Kp)
    b_p = _pad2(b, Kp, Np)

    ops = [a_p, b_p]
    in_specs = [
        pl.BlockSpec((tm, tk), lambda i, j, k: (i, k)),
        pl.BlockSpec((tk, tn), lambda i, j, k: (k, j)),
    ]
    if scale is not None:
        ops.append(_pad2(scale.astype(jnp.float32).reshape(-1, 1), Mp, 1))
        in_specs.append(pl.BlockSpec((tm, 1), lambda i, j, k: (i, 0)))
    if bias is not None:
        ops.append(_pad2(bias.astype(jnp.float32).reshape(1, -1), 1, Np))
        in_specs.append(pl.BlockSpec((1, tn), lambda i, j, k: (0, j)))

    if mlp is not None:
        dims = [N] + [w.shape[1] for (w, _) in mlp]
        dims_p = [_round_up(d, 128) for d in dims]
        dims_p[0] = Np
        for li, (w, bm) in enumerate(mlp):
            din, dout = dims_p[li], dims_p[li + 1]
            ops.append(_pad2(w.astype(jnp.float32), din, dout))
            in_specs.append(pl.BlockSpec((din, dout), lambda i, j, k: (0, 0)))
            ops.append(_pad2(bm.astype(jnp.float32).reshape(1, -1), 1, dout))
            in_specs.append(pl.BlockSpec((1, dout), lambda i, j, k: (0, 0)))
        out_cols = dims_p[-1]
        out_block = (tm, out_cols)
        out_index = lambda i, j, k: (i, 0)    # grid j has size 1 in the fused-MLP case
    else:
        out_cols = Np
        out_block = (tm, tn)
        out_index = lambda i, j, k: (i, j)

    kernel = functools.partial(
        _matmul_epilogue_kernel,
        has_scale=scale is not None,
        has_bias=bias is not None,
        n_mlp=0 if mlp is None else len(mlp),
        cast_a=(a_p.dtype == jnp.int8),
    )

    return pl.pallas_call(
        kernel,
        out_shape=jax.ShapeDtypeStruct((Mp, out_cols), out_dtype),
        grid=(Mp // tm, Np // tn, Kp // tk),
        in_specs=in_specs,
        out_specs=pl.BlockSpec(out_block, out_index),
        scratch_shapes=[pltpu.VMEM((tm, tn), jnp.float32)],
        compiler_params=pltpu.CompilerParams(
            dimension_semantics=("parallel", "parallel", "arbitrary")),
    )(*ops)


# ---------------------------------------------------------------------------
# Graph normalization: build the int8 (A + I) stream and dinv, already padded.
# ---------------------------------------------------------------------------
def build_propagation_operands(edge_index, num_nodes, pad_to):
    """Return (S_padded_int8, dinv_padded) with A_hat = diag(dinv) . S . diag(dinv).

    S = A^T + I in the PyG convention (messages flow source -> target; duplicate edges
    sum).  Entries are small integer counts, exactly representable in int8 (assumes
    < 128 duplicate edges per pair).  S is returned pre-padded to (pad_to, pad_to) in
    its streaming dtype so no extra f32 N x N pass happens before the first hop.
    """
    src, dst = edge_index[0], edge_index[1]
    adj = jnp.zeros((num_nodes, num_nodes), jnp.float32)
    adj = adj.at[dst, src].add(1.0)                       # row = target, col = source
    idx = jnp.arange(num_nodes)
    diag = jnp.diagonal(adj)
    adj = adj.at[idx, idx].set(jnp.where(diag > 0, diag, 1.0))   # add_remaining_self_loops
    deg = adj.sum(axis=1)
    dinv = jnp.where(deg > 0, jax.lax.rsqrt(deg), 0.0)
    pad = pad_to - num_nodes
    s_p = jnp.pad(adj, ((0, pad), (0, pad))).astype(jnp.int8)
    dinv_p = jnp.pad(dinv.reshape(-1, 1), ((0, pad), (0, 0)))
    return s_p, dinv_p


# ---------------------------------------------------------------------------
# Parameters
# ---------------------------------------------------------------------------
def init_params(key, num_feat, hidden_dim, num_class, num_layers):
    params = {}
    k0, key = jax.random.split(key)
    sgc_out = hidden_dim if num_layers >= 1 else num_class
    params["sgc_w"] = jax.random.normal(k0, (num_feat, sgc_out), jnp.float32) * 0.1
    params["sgc_b"] = jnp.zeros((sgc_out,), jnp.float32)

    if num_layers >= 1:
        dims = [hidden_dim] + [hidden_dim] * (num_layers - 1) + [num_class]
        mlp = []
        for li in range(len(dims) - 1):
            kw, key = jax.random.split(key)
            w = jax.random.normal(kw, (dims[li], dims[li + 1]), jnp.float32) * 0.1
            b = jnp.zeros((dims[li + 1],), jnp.float32)
            mlp.append((w, b))
        params["mlp"] = mlp
    return params


# ---------------------------------------------------------------------------
# Forward pass
# ---------------------------------------------------------------------------
def pygsgc_forward(params, x, s_p, dinv_p, K, num_layers):
    """out = MLP( A_hat^K (X W_sgc) + b_sgc )   with A_hat = D^{-1/2}(A+I)D^{-1/2}.

    Implemented in "scaled space" G = dinv * H so the N x N operand stays an exact
    int8 integer matrix every hop:
        G0      = dinv   * (X @ W)
        G_k     = dinv^2 * (S @ G_{k-1})        k = 1 .. K-1
        H_K     = dinv   * (S @ G_{K-1}) + b    (MLP fused into this epilogue)
    """
    N = x.shape[0]
    Np = s_p.shape[0]
    x_p = jnp.pad(x.astype(jnp.float32), ((0, Np - N), (0, 0)))

    sgc_w, sgc_b = params["sgc_w"], params["sgc_b"]
    mlp = params.get("mlp") if num_layers >= 1 else None
    dinv_sq = dinv_p * dinv_p

    if K == 0:
        out = fused_matmul(x_p, sgc_w, bias=sgc_b, mlp=mlp, out_dtype=jnp.float32)
    else:
        # G0 (bf16, stays padded -> feeds hop 1 directly with no re-pad / re-cast).
        g = fused_matmul(x_p, sgc_w, scale=dinv_p, out_dtype=jnp.bfloat16)
        # Intermediate hops: int8 S stream, bf16 H stream, f32 accumulation, no bias.
        for _ in range(K - 1):
            g = fused_matmul(s_p, g, scale=dinv_sq, out_dtype=jnp.bfloat16)
        # Last hop: dinv scale + bias + fused MLP head in the finalize epilogue.
        out = fused_matmul(s_p, g, scale=dinv_p, bias=sgc_b, mlp=mlp,
                           out_dtype=jnp.float32)

    n_out = mlp[-1][0].shape[1] if mlp else sgc_w.shape[1]
    return out[:N, :n_out], None, None


# ---------------------------------------------------------------------------
# Demo
# ---------------------------------------------------------------------------
if __name__ == "__main__":
    # args: K=2, num_layers=2, num_feat=16, hidden_dimension=32, num_class=4
    K = 2
    num_layers = 2
    num_nodes = 32
    num_feat = 16
    hidden_dim = 32
    num_class = 4

    key = jax.random.PRNGKey(0)
    kx, ke, kp = jax.random.split(key, 3)

    # Deterministic node features.
    x = jax.random.normal(kx, (num_nodes, num_feat), jnp.float32)

    # Deterministic undirected edge_index: ring graph + a few random chords.
    ring_src = jnp.arange(num_nodes)
    ring_dst = (ring_src + 1) % num_nodes
    extra_src = jax.random.randint(ke, (16,), 0, num_nodes)
    extra_dst = (extra_src + 5) % num_nodes
    src = jnp.concatenate([ring_src, ring_dst, extra_src, extra_dst])
    dst = jnp.concatenate([ring_dst, ring_src, extra_dst, extra_src])
    edge_index = jnp.stack([src, dst], axis=0)  # [2, E]

    Np = _node_pad(num_nodes)
    s_p, dinv_p = build_propagation_operands(edge_index, num_nodes, Np)
    params = init_params(kp, num_feat, hidden_dim, num_class, num_layers)

    out, _, _ = pygsgc_forward(params, x, s_p, dinv_p, K, num_layers)
    out = jax.block_until_ready(out)

    assert out.shape == (num_nodes, num_class), out.shape
    assert out.dtype == jnp.float32
    assert bool(jnp.all(jnp.isfinite(out)))

    # Pure-JAX fp32 dense reference (SGConv + MLP) for a sanity check.
    adj_f = s_p[:num_nodes, :num_nodes].astype(jnp.float32)
    dv = dinv_p[:num_nodes, 0]
    a_hat = dv[:, None] * adj_f * dv[None, :]
    h_ref = x @ params["sgc_w"]
    for _ in range(K):
        h_ref = a_hat @ h_ref
    h_ref = h_ref + params["sgc_b"]
    for li, (w, b) in enumerate(params["mlp"]):
        h_ref = h_ref @ w + b
        if li < len(params["mlp"]) - 1:
            h_ref = jnp.maximum(h_ref, 0.0)
    max_err = float(jnp.max(jnp.abs(out - h_ref)))
    assert max_err < 3e-2, max_err   # bf16 H stream across K hops; A_hat exact

    print("KERNEL_OK")
</pallas_src>

<mosaic_0001>
module attributes {stable_mosaic.version = 11 : i64} {
  func.func @_matmul_epilogue_kernel(%arg0: i32, %arg1: i32, %arg2: i32, %arg3: memref<128x128xf32, #tpu.memory_space<vmem>>, %arg4: memref<128x128xf32, #tpu.memory_space<vmem>>, %arg5: memref<128x1xf32, #tpu.memory_space<vmem>>, %arg6: memref<128x128xbf16, #tpu.memory_space<vmem>>, %arg7: memref<128x128xf32, #tpu.memory_space<vmem>>) attributes {dimension_semantics = [#tpu.dimension_semantics<parallel>, #tpu.dimension_semantics<parallel>, #tpu.dimension_semantics<arbitrary>], iteration_bounds = array<i64: 1, 1, 1>, scalar_prefetch = 0 : i64, scratch_operands = 1 : i64, tpu.core_type = #tpu.core_type<tc>, window_params = [{transform_indices = @transform_0, window_bounds = array<i64: 128, 128>}, {transform_indices = @transform_1, window_bounds = array<i64: 128, 128>}, {transform_indices = @transform_2, window_bounds = array<i64: 128, 1>}, {transform_indices = @transform_3, window_bounds = array<i64: 128, 128>}]} {
    %c0_i32 = arith.constant 0 : i32
    %0 = arith.cmpi eq, %arg2, %c0_i32 : i32
    %1 = arith.extui %0 : i1 to i32
    %c0_i32_0 = arith.constant 0 : i32
    %2 = arith.cmpi ne, %1, %c0_i32_0 : i32
    scf.if %2 {
      %cst_10 = arith.constant 0.000000e+00 : f32
      %12 = vector.broadcast %cst_10 : f32 to vector<128x128xf32>
      %c0_11 = arith.constant 0 : index
      %c0_12 = arith.constant 0 : index
      %13 = vector.load %arg7[%c0_11, %c0_12] : memref<128x128xf32, #tpu.memory_space<vmem>>, vector<128x128xf32>
      tpu.vector_store %arg7[%c0_11, %c0_12], %12 {strides = array<i32>} : memref<128x128xf32, #tpu.memory_space<vmem>>, vector<128x128xf32>,
    } else {
    }
    %c0 = arith.constant 0 : index
    %c0_1 = arith.constant 0 : index
    %3 = vector.load %arg3[%c0, %c0_1] : memref<128x128xf32, #tpu.memory_space<vmem>>, vector<128x128xf32>
    %c0_2 = arith.constant 0 : index
    %c0_3 = arith.constant 0 : index
    %4 = vector.load %arg7[%c0_2, %c0_3] : memref<128x128xf32, #tpu.memory_space<vmem>>, vector<128x128xf32>
    %c0_4 = arith.constant 0 : index
    %c0_5 = arith.constant 0 : index
    %5 = vector.load %arg4[%c0_4, %c0_5] : memref<128x128xf32, #tpu.memory_space<vmem>>, vector<128x128xf32>
    %cst = arith.constant dense<0.000000e+00> : vector<128x128xf32>
    %6 = tpu.matmul %3, %5, %cst {dimension_numbers = #tpu.dot_dimension_numbers<[1], [0], [0], [1], [0, 0, 1, 1], [], []>} : vector<128x128xf32>, vector<128x128xf32>, vector<128x128xf32> -> vector<128x128xf32>
    %7 = arith.addf %4, %6 : vector<128x128xf32>
    %c0_6 = arith.constant 0 : index
    %c0_7 = arith.constant 0 : index
    %8 = vector.load %arg7[%c0_6, %c0_7] : memref<128x128xf32, #tpu.memory_space<vmem>>, vector<128x128xf32>
    tpu.vector_store %arg7[%c0_6, %c0_7], %7 {strides = array<i32>} : memref<128x128xf32, #tpu.memory_space<vmem>>, vector<128x128xf32>,
    %c0_i32_8 = arith.constant 0 : i32
    %9 = arith.cmpi eq, %arg2, %c0_i32_8 : i32
    %10 = arith.extui %9 : i1 to i32
    %c0_i32_9 = arith.constant 0 : i32
    %11 = arith.cmpi ne, %10, %c0_i32_9 : i32
    scf.if %11 {
      %c0_10 = arith.constant 0 : index
      %c0_11 = arith.constant 0 : index
      %12 = vector.load %arg7[%c0_10, %c0_11] : memref<128x128xf32, #tpu.memory_space<vmem>>, vector<128x128xf32>
      %c0_12 = arith.constant 0 : index
      %c0_13 = arith.constant 0 : index
      %13 = vector.load %arg5[%c0_12, %c0_13] : memref<128x1xf32, #tpu.memory_space<vmem>>, vector<128x1xf32>
      %14 = vector.broadcast %13 : vector<128x1xf32> to vector<128x128xf32>
      %15 = arith.mulf %12, %14 : vector<128x128xf32>
      %16 = arith.truncf %15 : vector<128x128xf32> to vector<128x128xbf16>
      %c0_14 = arith.constant 0 : index
      %c0_15 = arith.constant 0 : index
      %17 = vector.load %arg6[%c0_14, %c0_15] : memref<128x128xbf16, #tpu.memory_space<vmem>>, vector<128x128xbf16>
      tpu.vector_store %arg6[%c0_14, %c0_15], %16 {strides = array<i32>} : memref<128x128xbf16, #tpu.memory_space<vmem>>, vector<128x128xbf16>,
    } else {
    }
    return
  }
  func.func @transform_0(%arg0: i32, %arg1: i32, %arg2: i32) -> (i32, i32) {
    %c0_i32 = arith.constant 0 : i32
    return %arg0, %arg2 : i32, i32
  }
  func.func @transform_1(%arg0: i32, %arg1: i32, %arg2: i32) -> (i32, i32) {
    %c0_i32 = arith.constant 0 : i32
    return %arg2, %arg1 : i32, i32
  }
  func.func @transform_2(%arg0: i32, %arg1: i32, %arg2: i32) -> (i32, i32) {
    %c0_i32 = arith.constant 0 : i32
    %c0_i32_0 = arith.constant 0 : i32
    return %arg0, %c0_i32 : i32, i32
  }
  func.func @transform_3(%arg0: i32, %arg1: i32, %arg2: i32) -> (i32, i32) {
    %c0_i32 = arith.constant 0 : i32
    return %arg0, %arg1 : i32, i32
  }
}

</mosaic_0001>

<llo_original>
// kernel: tpu_custom_call.1
$region0: #{tpu_custom_call.1}
  #allocation0 [shape = 'u32[]', space=smem, size = 0x4, offset = 0x4, fixed_abs, tag = 'smem constant byte address 0x4 - core index']
  #allocation1 [shape = 'u32[144,128]{1,0:T(1,128)}', space=vmem, size = 0x12000, scoped, tag = 'internal scratch']
  #allocation2 [shape = 'f32[128,128]{1,0:T(8,128)}', space=vmem, size = 0x10000, scoped, tag = 'scratch operand']
  %s0 = inlined_call_operand.vmem [shape: f32[128,128], index: 0, kind: input, shape index: {}]
  %s1 = inlined_call_operand.hbm [shape: f32[128,128], index: 1, kind: input, shape index: {}]
  %s2 = inlined_call_operand.vmem [shape: f32[128,1], index: 2, kind: input, shape index: {}]
  %s3 = inlined_call_operand.hbm [shape: bf16[128,128], index: 3, kind: output, shape index: {}]
  %s4 = sld [smem:[#allocation0]]
  $region34: #{tpu_custom_call.1} parent=0
    _
  %s6 = ssub.s32 1, %s4
  %s7 = scalar_select 0, %s6, %s4
  $region1: #{tpu_custom_call.1} parent=0
    #allocation3 [shape = 'u8[65536]{0}', space=vmem, size = 0x10000, scoped, tag = 'input window, operand 1, single buffered']
    #allocation4 [shape = 's32[1]{0}', space=sflag, size = 0x4, scoped, tag = 'scoped memory for tpu_custom_call.1']
    #allocation5 [shape = 's32[1]{0}', space=sflag, size = 0x4, scoped, tag = 'scoped memory for tpu_custom_call.1']
    #allocation6 [shape = 'u8[32768]{0}', space=vmem, size = 0x8000, scoped, tag = 'output window, operand 0, single buffered']
    %8 = vsyncpa [#allocation4], 0
    %9 = vsyncpa [#allocation5], 0
    // Predicated region
    $region2: #{tpu_custom_call.1} parent=1 // pred_check
      _
    $region3: #{tpu_custom_call.1} parent=1 // pred_check_branch
      %11 = sbr.rel (0) target = $region5
    $region4: #{tpu_custom_call.1} parent=1 // pred_region
      _
    $region5: #{tpu_custom_call.1} parent=1 // pred_fallthru
      _
    // Predicated region
    $region6: #{tpu_custom_call.1} parent=1 // pred_check
      _
    $region7: #{tpu_custom_call.1} parent=1 // pred_check_branch
      %13 = sbr.rel (0) target = $region9
    $region8: #{tpu_custom_call.1} parent=1 // pred_region
      %s15 = ssub.s32 2048, 2048
      %16 = vsyncadd [#allocation4], %s15
      %s17 = sshll.u32 [#allocation3], 4
      %s18 = int_to_ptr.vmem [resolvable:$true] %s17
      %23 = dma.hbm_to_vmem [thread:$0]  %s1, 2048, %s18, [#allocation4], 128, 128, 8
    $region9: #{tpu_custom_call.1} parent=1 // pred_fallthru
      _
    // Predicated region
    $region10: #{tpu_custom_call.1} parent=1 // pred_check
      _
    $region11: #{tpu_custom_call.1} parent=1 // pred_check_branch
      %25 = sbr.rel (0) target = $region13
    $region12: #{tpu_custom_call.1} parent=1 // pred_region
      _
    $region13: #{tpu_custom_call.1} parent=1 // pred_fallthru
      _
    // Predicated region
    $region14: #{tpu_custom_call.1} parent=1 // pred_check
      _
    $region15: #{tpu_custom_call.1} parent=1 // pred_check_branch
      %27 = sbr.rel (0) target = $region17
    $region16: #{tpu_custom_call.1} parent=1 // pred_region
      %28 = dma.done [#allocation4], 2048
    $region17: #{tpu_custom_call.1} parent=1 // pred_fallthru
      _
    %p29 = scmp.eq.s32.totalorder 0, 0
    // Predicated region
    $region18: #{tpu_custom_call.1} parent=1 // pred_check
      %p30 = pneg %p29
    $region19: #{tpu_custom_call.1} parent=1 // pred_check_branch
      %32 = sbr.rel (%p30) target = $region21
    $region20: #{tpu_custom_call.1} parent=1 // pred_region
      %33 = vst [vmem:[#allocation2] sm:$0xff] 0.0
      %34 = vst [vmem:[#allocation2 + $0x8] sm:$0xff] 0.0
      %35 = vst [vmem:[#allocation2 + $0x10] sm:$0xff] 0.0
      %36 = vst [vmem:[#allocation2 + $0x18] sm:$0xff] 0.0
      %37 = vst [vmem:[#allocation2 + $0x20] sm:$0xff] 0.0
      %38 = vst [vmem:[#allocation2 + $0x28] sm:$0xff] 0.0
      %39 = vst [vmem:[#allocation2 + $0x30] sm:$0xff] 0.0
      %40 = vst [vmem:[#allocation2 + $0x38] sm:$0xff] 0.0
      %41 = vst [vmem:[#allocation2 + $0x40] sm:$0xff] 0.0
      %42 = vst [vmem:[#allocation2 + $0x48] sm:$0xff] 0.0
      %43 = vst [vmem:[#allocation2 + $0x50] sm:$0xff] 0.0
      %44 = vst [vmem:[#allocation2 + $0x58] sm:$0xff] 0.0
      %45 = vst [vmem:[#allocation2 + $0x60] sm:$0xff] 0.0
      %46 = vst [vmem:[#allocation2 + $0x68] sm:$0xff] 0.0
      %47 = vst [vmem:[#allocation2 + $0x70] sm:$0xff] 0.0
      %48 = vst [vmem:[#allocation2 + $0x78] sm:$0xff] 0.0
    $region21: #{tpu_custom_call.1} parent=1 // pred_fallthru
      _
    %v49 = vld [vmem:[%s0] sm:$0xff]
    %v50 = vld [vmem:[%s0 + $0x8] sm:$0xff]
    %v51 = vld [vmem:[%s0 + $0x10] sm:$0xff]
    %v52 = vld [vmem:[%s0 + $0x18] sm:$0xff]
    %v53 = vld [vmem:[%s0 + $0x20] sm:$0xff]
    %v54 = vld [vmem:[%s0 + $0x28] sm:$0xff]
    %v55 = vld [vmem:[%s0 + $0x30] sm:$0xff]
    %v56 = vld [vmem:[%s0 + $0x38] sm:$0xff]
    %v57 = vld [vmem:[%s0 + $0x40] sm:$0xff]
    %v58 = vld [vmem:[%s0 + $0x48] sm:$0xff]
    %v59 = vld [vmem:[%s0 + $0x50] sm:$0xff]
    %v60 = vld [vmem:[%s0 + $0x58] sm:$0xff]
    %v61 = vld [vmem:[%s0 + $0x60] sm:$0xff]
    %v62 = vld [vmem:[%s0 + $0x68] sm:$0xff]
    %v63 = vld [vmem:[%s0 + $0x70] sm:$0xff]
    %v64 = vld [vmem:[%s0 + $0x78] sm:$0xff]
    %v65 = vld [vmem:[#allocation2] sm:$0xff]
    %v66 = vld [vmem:[#allocation2 + $0x8] sm:$0xff]
    %v67 = vld [vmem:[#allocation2 + $0x10] sm:$0xff]
    %v68 = vld [vmem:[#allocation2 + $0x18] sm:$0xff]
    %v69 = vld [vmem:[#allocation2 + $0x20] sm:$0xff]
    %v70 = vld [vmem:[#allocation2 + $0x28] sm:$0xff]
    %v71 = vld [vmem:[#allocation2 + $0x30] sm:$0xff]
    %v72 = vld [vmem:[#allocation2 + $0x38] sm:$0xff]
    %v73 = vld [vmem:[#allocation2 + $0x40] sm:$0xff]
    %v74 = vld [vmem:[#allocation2 + $0x48] sm:$0xff]
    %v75 = vld [vmem:[#allocation2 + $0x50] sm:$0xff]
    %v76 = vld [vmem:[#allocation2 + $0x58] sm:$0xff]
    %v77 = vld [vmem:[#allocation2 + $0x60] sm:$0xff]
    %v78 = vld [vmem:[#allocation2 + $0x68] sm:$0xff]
    %v79 = vld [vmem:[#allocation2 + $0x70] sm:$0xff]
    %v80 = vld [vmem:[#allocation2 + $0x78] sm:$0xff]
    %v81 = vld [vmem:[#allocation3] sm:$0xff]
    %v82 = vld [vmem:[#allocation3 + $0x8] sm:$0xff]
    %v83 = vld [vmem:[#allocation3 + $0x10] sm:$0xff]
    %v84 = vld [vmem:[#allocation3 + $0x18] sm:$0xff]
    %v85 = vld [vmem:[#allocation3 + $0x20] sm:$0xff]
    %v86 = vld [vmem:[#allocation3 + $0x28] sm:$0xff]
    %v87 = vld [vmem:[#allocation3 + $0x30] sm:$0xff]
    %v88 = vld [vmem:[#allocation3 + $0x38] sm:$0xff]
    %v89 = vld [vmem:[#allocation3 + $0x40] sm:$0xff]
    %v90 = vld [vmem:[#allocation3 + $0x48] sm:$0xff]
    %v91 = vld [vmem:[#allocation3 + $0x50] sm:$0xff]
    %v92 = vld [vmem:[#allocation3 + $0x58] sm:$0xff]
    %v93 = vld [vmem:[#allocation3 + $0x60] sm:$0xff]
    %v94 = vld [vmem:[#allocation3 + $0x68] sm:$0xff]
    %v95 = vld [vmem:[#allocation3 + $0x70] sm:$0xff]
    %v96 = vld [vmem:[#allocation3 + $0x78] sm:$0xff]
    %97 = vmatprep.subr.mxu0 0.0
    %98 = vmatpush1.msra.mxu0 %v96
    %99 = vmatprep.subr.mxu0 0.0
    %100 = vmatpush1.msra.mxu0 %v95
    %101 = vmatprep.subr.mxu0 0.0
    %102 = vmatpush1.msra.mxu0 %v94
    %103 = vmatprep.subr.mxu0 0.0
    %104 = vmatpush1.msra.mxu0 %v93
    %105 = vmatprep.subr.mxu0 0.0
    %106 = vmatpush1.msra.mxu0 %v92
    %107 = vmatprep.subr.mxu0 0.0
    %108 = vmatpush1.msra.mxu0 %v91
    %109 = vmatprep.subr.mxu0 0.0
    %110 = vmatpush1.msra.mxu0 %v90
    %111 = vmatprep.subr.mxu0 0.0
    %112 = vmatpush1.msra.mxu0 %v89
    %113 = vmatprep.subr.mxu0 0.0
    %114 = vmatpush1.msra.mxu0 %v88
    %115 = vmatprep.subr.mxu0 0.0
    %116 = vmatpush1.msra.mxu0 %v87
    %117 = vmatprep.subr.mxu0 0.0
    %118 = vmatpush1.msra.mxu0 %v86
    %119 = vmatprep.subr.mxu0 0.0
    %120 = vmatpush1.msra.mxu0 %v85
    %121 = vmatprep.subr.mxu0 0.0
    %122 = vmatpush1.msra.mxu0 %v84
    %123 = vmatprep.subr.mxu0 0.0
    %124 = vmatpush1.msra.mxu0 %v83
    %125 = vmatprep.subr.mxu0 0.0
    %126 = vmatpush1.msra.mxu0 %v82
    %127 = vmatprep.subr.mxu0 0.0
    %128 = vmatpush1.msra.mxu0 %v81
    %129 = vmatprep.subr.mxu0 0.0
    %130 = vmatpush2.msra.mxu0 0.0
    %131 = vmatprep.subr.mxu0 0.0
    %132 = vmatpush2.msra.mxu0 0.0
    %133 = vmatprep.subr.mxu0 0.0
    %134 = vmatpush2.msra.mxu0 0.0
    %135 = vmatprep.subr.mxu0 0.0
    %136 = vmatpush2.msra.mxu0 0.0
    %137 = vmatprep.subr.mxu0 0.0
    %138 = vmatpush2.msra.mxu0 0.0
    %139 = vmatprep.subr.mxu0 0.0
    %140 = vmatpush2.msra.mxu0 0.0
    %141 = vmatprep.subr.mxu0 0.0
    %142 = vmatpush2.msra.mxu0 0.0
    %143 = vmatprep.subr.mxu0 0.0
    %144 = vmatpush2.msra.mxu0 0.0
    %145 = vmatprep.subr.mxu0 0.0
    %146 = vmatpush2.msra.mxu0 0.0
    %147 = vmatprep.subr.mxu0 0.0
    %148 = vmatpush2.msra.mxu0 0.0
    %149 = vmatprep.subr.mxu0 0.0
    %150 = vmatpush2.msra.mxu0 0.0
    %151 = vmatprep.subr.mxu0 0.0
    %152 = vmatpush2.msra.mxu0 0.0
    %153 = vmatprep.subr.mxu0 0.0
    %154 = vmatpush2.msra.mxu0 0.0
    %155 = vmatprep.subr.mxu0 0.0
    %156 = vmatpush2.msra.mxu0 0.0
    %157 = vmatprep.subr.mxu0 0.0
    %158 = vmatpush2.msra.mxu0 0.0
    %159 = vmatprep.subr.mxu0 0.0
    %160 = vmatpush2.msra.mxu0 0.0
    %161 = vmatprep.mubr.f32.mxu0 0.0
    %162 = vmatmul.mubr.f32.gmra.mxu0 %v49
    %v163 = vpop.f32.mrf.mxu0
    %v164 = vadd.f32 0.0, %v163
    %v165 = vpop.f32.mrf.mxu0
    %166 = vmatprep.mubr.f32.mxu0 0.0
    %167 = vmatmul.mubr.f32.gmra.mxu0 %v50
    %v168 = vpop.f32.mrf.mxu0
    %v169 = vadd.f32 0.0, %v168
    %v170 = vpop.f32.mrf.mxu0
    %171 = vmatprep.mubr.f32.mxu0 0.0
    %172 = vmatmul.mubr.f32.gmra.mxu0 %v51
    %v173 = vpop.f32.mrf.mxu0
    %v174 = vadd.f32 0.0, %v173
    %v175 = vpop.f32.mrf.mxu0
    %176 = vmatprep.mubr.f32.mxu0 0.0
    %177 = vmatmul.mubr.f32.gmra.mxu0 %v52
    %v178 = vpop.f32.mrf.mxu0
    %v179 = vadd.f32 0.0, %v178
    %v180 = vpop.f32.mrf.mxu0
    %181 = vmatprep.mubr.f32.mxu0 0.0
    %182 = vmatmul.mubr.f32.gmra.mxu0 %v53
    %v183 = vpop.f32.mrf.mxu0
    %v184 = vadd.f32 0.0, %v183
    %v185 = vpop.f32.mrf.mxu0
    %186 = vmatprep.mubr.f32.mxu0 0.0
    %187 = vmatmul.mubr.f32.gmra.mxu0 %v54
    %v188 = vpop.f32.mrf.mxu0
    %v189 = vadd.f32 0.0, %v188
    %v190 = vpop.f32.mrf.mxu0
    %191 = vmatprep.mubr.f32.mxu0 0.0
    %192 = vmatmul.mubr.f32.gmra.mxu0 %v55
    %v193 = vpop.f32.mrf.mxu0
    %v194 = vadd.f32 0.0, %v193
    %v195 = vpop.f32.mrf.mxu0
    %196 = vmatprep.mubr.f32.mxu0 0.0
    %197 = vmatmul.mubr.f32.gmra.mxu0 %v56
    %v198 = vpop.f32.mrf.mxu0
    %v199 = vadd.f32 0.0, %v198
    %v200 = vpop.f32.mrf.mxu0
    %201 = vmatprep.mubr.f32.mxu0 0.0
    %202 = vmatmul.mubr.f32.gmra.mxu0 %v57
    %v203 = vpop.f32.mrf.mxu0
    %v204 = vadd.f32 0.0, %v203
    %v205 = vpop.f32.mrf.mxu0
    %206 = vmatprep.mubr.f32.mxu0 0.0
    %207 = vmatmul.mubr.f32.gmra.mxu0 %v58
    %v208 = vpop.f32.mrf.mxu0
    %v209 = vadd.f32 0.0, %v208
    %v210 = vpop.f32.mrf.mxu0
    %211 = vmatprep.mubr.f32.mxu0 0.0
    %212 = vmatmul.mubr.f32.gmra.mxu0 %v59
    %v213 = vpop.f32.mrf.mxu0
    %v214 = vadd.f32 0.0, %v213
    %v215 = vpop.f32.mrf.mxu0
    %216 = vmatprep.mubr.f32.mxu0 0.0
    %217 = vmatmul.mubr.f32.gmra.mxu0 %v60
    %v218 = vpop.f32.mrf.mxu0
    %v219 = vadd.f32 0.0, %v218
    %v220 = vpop.f32.mrf.mxu0
    %221 = vmatprep.mubr.f32.mxu0 0.0
    %222 = vmatmul.mubr.f32.gmra.mxu0 %v61
    %v223 = vpop.f32.mrf.mxu0
    %v224 = vadd.f32 0.0, %v223
    %v225 = vpop.f32.mrf.mxu0
    %226 = vmatprep.mubr.f32.mxu0 0.0
    %227 = vmatmul.mubr.f32.gmra.mxu0 %v62
    %v228 = vpop.f32.mrf.mxu0
    %v229 = vadd.f32 0.0, %v228
    %v230 = vpop.f32.mrf.mxu0
    %231 = vmatprep.mubr.f32.mxu0 0.0
    %232 = vmatmul.mubr.f32.gmra.mxu0 %v63
    %v233 = vpop.f32.mrf.mxu0
    %v234 = vadd.f32 0.0, %v233
    %v235 = vpop.f32.mrf.mxu0
    %236 = vmatprep.mubr.f32.mxu0 0.0
    %237 = vmatmul.mubr.f32.gmra.mxu0 %v64
    %v238 = vpop.f32.mrf.mxu0
    %v239 = vadd.f32 0.0, %v238
    %v240 = vpop.f32.mrf.mxu0
    %241 = vdwg.mxu0
    %v242 = vadd.f32 %v65, %v164
    %v243 = vadd.f32 %v66, %v169
    %v244 = vadd.f32 %v67, %v174
    %v245 = vadd.f32 %v68, %v179
    %v246 = vadd.f32 %v69, %v184
    %v247 = vadd.f32 %v70, %v189
    %v248 = vadd.f32 %v71, %v194
    %v249 = vadd.f32 %v72, %v199
    %v250 = vadd.f32 %v73, %v204
    %v251 = vadd.f32 %v74, %v209
    %v252 = vadd.f32 %v75, %v214
    %v253 = vadd.f32 %v76, %v219
    %v254 = vadd.f32 %v77, %v224
    %v255 = vadd.f32 %v78, %v229
    %v256 = vadd.f32 %v79, %v234
    %v257 = vadd.f32 %v80, %v239
    %258 = vst [vmem:[#allocation2] sm:$0xff] %v242
    %259 = vst [vmem:[#allocation2 + $0x8] sm:$0xff] %v243
    %260 = vst [vmem:[#allocation2 + $0x10] sm:$0xff] %v244
    %261 = vst [vmem:[#allocation2 + $0x18] sm:$0xff] %v245
    %262 = vst [vmem:[#allocation2 + $0x20] sm:$0xff] %v246
    %263 = vst [vmem:[#allocation2 + $0x28] sm:$0xff] %v247
    %264 = vst [vmem:[#allocation2 + $0x30] sm:$0xff] %v248
    %265 = vst [vmem:[#allocation2 + $0x38] sm:$0xff] %v249
    %266 = vst [vmem:[#allocation2 + $0x40] sm:$0xff] %v250
    %267 = vst [vmem:[#allocation2 + $0x48] sm:$0xff] %v251
    %268 = vst [vmem:[#allocation2 + $0x50] sm:$0xff] %v252
    %269 = vst [vmem:[#allocation2 + $0x58] sm:$0xff] %v253
    %270 = vst [vmem:[#allocation2 + $0x60] sm:$0xff] %v254
    %271 = vst [vmem:[#allocation2 + $0x68] sm:$0xff] %v255
    %272 = vst [vmem:[#allocation2 + $0x70] sm:$0xff] %v256
    %273 = vst [vmem:[#allocation2 + $0x78] sm:$0xff] %v257
    // Predicated region
    $region22: #{tpu_custom_call.1} parent=1 // pred_check
      %p274 = pneg %p29
    $region23: #{tpu_custom_call.1} parent=1 // pred_check_branch
      %276 = sbr.rel (%p274) target = $region25
    $region24: #{tpu_custom_call.1} parent=1 // pred_region
      %v277 = vld [vmem:[#allocation2] sm:$0xff]
      %v278 = vld [vmem:[#allocation2 + $0x8] sm:$0xff]
      %v279 = vld [vmem:[#allocation2 + $0x10] sm:$0xff]
      %v280 = vld [vmem:[#allocation2 + $0x18] sm:$0xff]
      %v281 = vld [vmem:[#allocation2 + $0x20] sm:$0xff]
      %v282 = vld [vmem:[#allocation2 + $0x28] sm:$0xff]
      %v283 = vld [vmem:[#allocation2 + $0x30] sm:$0xff]
      %v284 = vld [vmem:[#allocation2 + $0x38] sm:$0xff]
      %v285 = vld [vmem:[#allocation2 + $0x40] sm:$0xff]
      %v286 = vld [vmem:[#allocation2 + $0x48] sm:$0xff]
      %v287 = vld [vmem:[#allocation2 + $0x50] sm:$0xff]
      %v288 = vld [vmem:[#allocation2 + $0x58] sm:$0xff]
      %v289 = vld [vmem:[#allocation2 + $0x60] sm:$0xff]
      %v290 = vld [vmem:[#allocation2 + $0x68] sm:$0xff]
      %v291 = vld [vmem:[#allocation2 + $0x70] sm:$0xff]
      %v292 = vld [vmem:[#allocation2 + $0x78] sm:$0xff]
      %v293 = vld [vmem:[%s2] sm:$0xff]
      %v294 = vld [vmem:[%s2 + $0x8] sm:$0xff]
      %v295 = vld [vmem:[%s2 + $0x10] sm:$0xff]
      %v296 = vld [vmem:[%s2 + $0x18] sm:$0xff]
      %v297 = vld [vmem:[%s2 + $0x20] sm:$0xff]
      %v298 = vld [vmem:[%s2 + $0x28] sm:$0xff]
      %v299 = vld [vmem:[%s2 + $0x30] sm:$0xff]
      %v300 = vld [vmem:[%s2 + $0x38] sm:$0xff]
      %v301 = vld [vmem:[%s2 + $0x40] sm:$0xff]
      %v302 = vld [vmem:[%s2 + $0x48] sm:$0xff]
      %v303 = vld [vmem:[%s2 + $0x50] sm:$0xff]
      %v304 = vld [vmem:[%s2 + $0x58] sm:$0xff]
      %v305 = vld [vmem:[%s2 + $0x60] sm:$0xff]
      %v306 = vld [vmem:[%s2 + $0x68] sm:$0xff]
      %v307 = vld [vmem:[%s2 + $0x70] sm:$0xff]
      %v308 = vld [vmem:[%s2 + $0x78] sm:$0xff]
      %310 = vset.pattern.permute.xlu0 0
      %311 = vperm.xlu0 %310, %v293
      %v312 = vpop.permute.xlu0 %311
      %315 = vset.pattern.permute.xlu0 0
      %316 = vperm.xlu0 %315, %v294
      %v317 = vpop.permute.xlu0 %316
      %320 = vset.pattern.permute.xlu0 0
      %321 = vperm.xlu0 %320, %v295
      %v322 = vpop.permute.xlu0 %321
      %325 = vset.pattern.permute.xlu0 0
      %326 = vperm.xlu0 %325, %v296
      %v327 = vpop.permute.xlu0 %326
      %330 = vset.pattern.permute.xlu0 0
      %331 = vperm.xlu0 %330, %v297
      %v332 = vpop.permute.xlu0 %331
      %335 = vset.pattern.permute.xlu0 0
      %336 = vperm.xlu0 %335, %v298
      %v337 = vpop.permute.xlu0 %336
      %340 = vset.pattern.permute.xlu0 0
      %341 = vperm.xlu0 %340, %v299
      %v342 = vpop.permute.xlu0 %341
      %345 = vset.pattern.permute.xlu0 0
      %346 = vperm.xlu0 %345, %v300
      %v347 = vpop.permute.xlu0 %346
      %350 = vset.pattern.permute.xlu0 0
      %351 = vperm.xlu0 %350, %v301
      %v352 = vpop.permute.xlu0 %351
      %355 = vset.pattern.permute.xlu0 0
      %356 = vperm.xlu0 %355, %v302
      %v357 = vpop.permute.xlu0 %356
      %360 = vset.pattern.permute.xlu0 0
      %361 = vperm.xlu0 %360, %v303
      %v362 = vpop.permute.xlu0 %361
      %365 = vset.pattern.permute.xlu0 0
      %366 = vperm.xlu0 %365, %v304
      %v367 = vpop.permute.xlu0 %366
      %370 = vset.pattern.permute.xlu0 0
      %371 = vperm.xlu0 %370, %v305
      %v372 = vpop.permute.xlu0 %371
      %375 = vset.pattern.permute.xlu0 0
      %376 = vperm.xlu0 %375, %v306
      %v377 = vpop.permute.xlu0 %376
      %380 = vset.pattern.permute.xlu0 0
      %381 = vperm.xlu0 %380, %v307
      %v382 = vpop.permute.xlu0 %381
      %385 = vset.pattern.permute.xlu0 0
      %386 = vperm.xlu0 %385, %v308
      %v387 = vpop.permute.xlu0 %386
      %v389 = vmul.f32 %v277, %v312
      %v390 = vmul.f32 %v278, %v317
      %v391 = vmul.f32 %v279, %v322
      %v392 = vmul.f32 %v280, %v327
      %v393 = vmul.f32 %v281, %v332
      %v394 = vmul.f32 %v282, %v337
      %v395 = vmul.f32 %v283, %v342
      %v396 = vmul.f32 %v284, %v347
      %v397 = vmul.f32 %v285, %v352
      %v398 = vmul.f32 %v286, %v357
      %v399 = vmul.f32 %v287, %v362
      %v400 = vmul.f32 %v288, %v367
      %v401 = vmul.f32 %v289, %v372
      %v402 = vmul.f32 %v290, %v377
      %v403 = vmul.f32 %v291, %v382
      %v404 = vmul.f32 %v292, %v387
      %v405 = vpack.c.bf16 %v390, %v389
      %v406 = vpack.c.bf16 %v392, %v391
      %v407 = vpack.c.bf16 %v394, %v393
      %v408 = vpack.c.bf16 %v396, %v395
      %v409 = vpack.c.bf16 %v398, %v397
      %v410 = vpack.c.bf16 %v400, %v399
      %v411 = vpack.c.bf16 %v402, %v401
      %v412 = vpack.c.bf16 %v404, %v403
      %v421 = vunpack.c.l.b16 %v405
      %v422 = vunpack.c.h.b16 %v405
      %v423 = vunpack.c.l.b16 %v406
      %v424 = vunpack.c.h.b16 %v406
      %v425 = vunpack.c.l.b16 %v407
      %v426 = vunpack.c.h.b16 %v407
      %v427 = vunpack.c.l.b16 %v408
      %v428 = vunpack.c.h.b16 %v408
      %v429 = vunpack.c.l.b16 %v409
      %v430 = vunpack.c.h.b16 %v409
      %v431 = vunpack.c.l.b16 %v410
      %v432 = vunpack.c.h.b16 %v410
      %v433 = vunpack.c.l.b16 %v411
      %v434 = vunpack.c.h.b16 %v411
      %v435 = vunpack.c.l.b16 %v412
      %v436 = vunpack.c.h.b16 %v412
      %v437 = vpack.c.b16 %v421, %v421
      %v438 = vpack.c.b16 %v422, %v422
      %v439 = vpack.c.b16 %v423, %v423
      %v440 = vpack.c.b16 %v424, %v424
      %v441 = vpack.c.b16 %v425, %v425
      %v442 = vpack.c.b16 %v426, %v426
      %v443 = vpack.c.b16 %v427, %v427
      %v444 = vpack.c.b16 %v428, %v428
      %v445 = vpack.c.b16 %v429, %v429
      %v446 = vpack.c.b16 %v430, %v430
      %v447 = vpack.c.b16 %v431, %v431
      %v448 = vpack.c.b16 %v432, %v432
      %v449 = vpack.c.b16 %v433, %v433
      %v450 = vpack.c.b16 %v434, %v434
      %v451 = vpack.c.b16 %v435, %v435
      %v452 = vpack.c.b16 %v436, %v436
      %469 = vst [vmem:[#allocation6] sm:$0xf] %v437
      %470 = vst [vmem:[#allocation6 + $0x4] sm:$0xf] %v438
      %471 = vst [vmem:[#allocation6 + $0x8] sm:$0xf] %v439
      %472 = vst [vmem:[#allocation6 + $0xc] sm:$0xf] %v440
      %473 = vst [vmem:[#allocation6 + $0x10] sm:$0xf] %v441
      %474 = vst [vmem:[#allocation6 + $0x14] sm:$0xf] %v442
      %475 = vst [vmem:[#allocation6 + $0x18] sm:$0xf] %v443
      %476 = vst [vmem:[#allocation6 + $0x1c] sm:$0xf] %v444
      %477 = vst [vmem:[#allocation6 + $0x20] sm:$0xf] %v445
      %478 = vst [vmem:[#allocation6 + $0x24] sm:$0xf] %v446
      %479 = vst [vmem:[#allocation6 + $0x28] sm:$0xf] %v447
      %480 = vst [vmem:[#allocation6 + $0x2c] sm:$0xf] %v448
      %481 = vst [vmem:[#allocation6 + $0x30] sm:$0xf] %v449
      %482 = vst [vmem:[#allocation6 + $0x34] sm:$0xf] %v450
      %483 = vst [vmem:[#allocation6 + $0x38] sm:$0xf] %v451
      %484 = vst [vmem:[#allocation6 + $0x3c] sm:$0xf] %v452
    $region25: #{tpu_custom_call.1} parent=1 // pred_fallthru
      _
    // Predicated region
    $region26: #{tpu_custom_call.1} parent=1 // pred_check
      _
    $region27: #{tpu_custom_call.1} parent=1 // pred_check_branch
      %486 = sbr.rel (0) target = $region29
    $region28: #{tpu_custom_call.1} parent=1 // pred_region
      %s488 = ssub.s32 1024, 1024
      %489 = vsyncadd [#allocation5], %s488
      %s490 = sshll.u32 [#allocation6], 4
      %s491 = int_to_ptr.vmem [resolvable:$true] %s490
      %496 = dma.vmem_to_hbm [thread:$0]  %s491, 1024, %s3, [#allocation5], 64, 64, 4
    $region29: #{tpu_custom_call.1} parent=1 // pred_fallthru
      _
    // Predicated region
    $region30: #{tpu_custom_call.1} parent=1 // pred_check
      _
    $region31: #{tpu_custom_call.1} parent=1 // pred_check_branch
      %498 = sbr.rel (0) target = $region33
    $region32: #{tpu_custom_call.1} parent=1 // pred_region
      %499 = dma.done [#allocation5], 1024
    $region33: #{tpu_custom_call.1} parent=1 // pred_fallthru
      _
    %500 = vsyncpa [#allocation4], 1
    %501 = vsyncpa [#allocation5], 1

</llo_original>
